<compile_context>
chip_gen: v5e
topology: v5e:2x2
jax: 0.10.0
libtpu: 0.0.40
codegen_flags: <defaults>
</compile_context>

<pallas_src>
import functools
import math

import numpy as np

import jax
import jax.numpy as jnp
from jax import lax
from jax.experimental import pallas as pl
from jax.experimental.pallas import tpu as pltpu

_LANE = 128
_MIB = 1024 * 1024


def _round_up(a, b):
    return (a + b - 1) // b * b


def _vmem_capacity_bytes():
    """Generation-aware VMEM capacity (128 MiB v5e/v6e, 64 MiB per-core v7x)."""
    try:
        info = pltpu.get_tpu_info()
        cap = int(getattr(info, "vmem_capacity_bytes", 0) or 0)
        if cap > 0:
            return cap
    except Exception:
        pass
    return 64 * _MIB  # conservative fallback = v7x per-TensorCore


def _moe_step_vmem(tn, h, ti, e, csize):
    """Rough per-step VMEM residency of the MoE kernel (double-buffered blocks)."""
    hp = _round_up(h, _LANE)
    return (2 * tn * hp * csize                      # x tile (compute dtype)
            + 2 * _round_up(h, 8) * _round_up(ti, _LANE) * csize   # W1 tile [H, tI]
            + 2 * _round_up(ti, 8) * hp * csize      # W2 tile [tI, H]
            + 2 * tn * _round_up(e, _LANE) * 4       # coef tile (f32)
            + 2 * tn * hp * 4)                       # output tile (f32 accumulator)


def _pick_inner_tile(inner, hidden, tn, e, csize, budget):
    cands = sorted({t for t in (inner, 2048, 1024, 512, 384, 256, 128)
                    if 0 < t <= inner and inner % t == 0}, reverse=True)
    if not cands:
        cands = [inner]
    for t in cands:
        if _moe_step_vmem(tn, hidden, t, e, csize) <= budget:
            return t
    return cands[-1]


# ----------------------------- gate (router) kernel --------------------------


def _gate_kernel(x_ref, wg_ref, probs_ref, logits_ref, *, num_experts):
    x = x_ref[...]                                                        # [tN, H] f32
    logits = jnp.dot(x, wg_ref[...], preferred_element_type=jnp.float32)  # [tN, Ep]
    logits_ref[...] = logits
    lane = lax.broadcasted_iota(jnp.int32, logits.shape, 1)
    masked = jnp.where(lane < num_experts, logits, -1e30)                 # ignore lane padding
    m = jnp.max(masked, axis=-1, keepdims=True)
    ex = jnp.exp(masked - m)
    # exact division (not approx reciprocal) so routing decisions match torch softmax
    probs_ref[...] = ex / jnp.sum(ex, axis=-1, keepdims=True)


def gate_softmax(x_flat, wg_t_pad, num_experts, *, max_token_tile=512):
    """Router logits + softmax, tiled over tokens; outputs lane-dense (E padded to 128)."""
    N, H = x_flat.shape
    Ep = wg_t_pad.shape[1]
    cap = _vmem_capacity_bytes()
    budget = int(0.6 * cap)

    def est(tn):
        return (2 * tn * _round_up(H, _LANE) * 4
                + 2 * _round_up(H, 8) * Ep * 4
                + 2 * 2 * tn * Ep * 4)

    tN = min(max_token_tile, _round_up(N, 16))
    while tN > 16 and est(tN) > budget:
        tN = max(16, tN // 2)
    Np = _round_up(N, tN)
    xp = x_flat if Np == N else jnp.pad(x_flat, ((0, Np - N), (0, 0)))
    vmem_limit = int(min(cap, max(32 * _MIB, 2 * est(tN))))

    probs, logits = pl.pallas_call(
        functools.partial(_gate_kernel, num_experts=num_experts),
        out_shape=(
            jax.ShapeDtypeStruct((Np, Ep), jnp.float32),
            jax.ShapeDtypeStruct((Np, Ep), jnp.float32),
        ),
        grid=(Np // tN,),
        in_specs=[
            pl.BlockSpec((tN, H), lambda i: (i, 0)),
            pl.BlockSpec((H, Ep), lambda i: (0, 0)),   # resident (constant block index)
        ],
        out_specs=(
            pl.BlockSpec((tN, Ep), lambda i: (i, 0)),  # lane-dense outputs
            pl.BlockSpec((tN, Ep), lambda i: (i, 0)),
        ),
        compiler_params=pltpu.CompilerParams(
            dimension_semantics=("parallel",),
            vmem_limit_bytes=vmem_limit),
    )(xp, wg_t_pad)
    return probs[:N, :num_experts], logits[:N, :num_experts]


# ------------------------------- MoE FFN kernel -------------------------------


def _moe_kernel(tile_ref, exp_ref, first_ref, valid_ref,
                x_ref, w1_ref, w2_ref, coef_ref, o_ref):
    # grid = (group g, inner_tile it); group = one active (token_tile, expert) pair.
    g = pl.program_id(0)
    it = pl.program_id(1)

    # Zero the resident f32 output block on first touch of this token tile.
    @pl.when(jnp.logical_and(first_ref[g] != 0, it == 0))
    def _():
        o_ref[...] = jnp.zeros_like(o_ref)

    # Padding groups (scheduling slack) carry valid=0 and repeat the previous group's
    # block indices, so their DMAs are elided and they do no work.
    @pl.when(valid_ref[g] != 0)
    def _():
        e = exp_ref[g]
        x = x_ref[...]                        # [tN, H]   compute dtype (f32 or bf16)
        w1 = w1_ref[0, 0]                     # [H, tI]   contiguous pre-blocked tile
        w2 = w2_ref[0]                        # [tI, H]
        coef = coef_ref[...]                  # [tN, E]   f32, resident per tile
        lane = lax.broadcasted_iota(jnp.int32, coef.shape, 1)
        ce = jnp.sum(jnp.where(lane == e, coef, 0.0), axis=-1, keepdims=True)  # [tN, 1]

        h = jnp.dot(x, w1, preferred_element_type=jnp.float32)                 # [tN, tI] f32
        # exact GELU (torch nn.GELU default), kept in f32 regardless of compute dtype
        h = 0.5 * h * (1.0 + lax.erf(h * (1.0 / math.sqrt(2.0))))
        y = jnp.dot(h.astype(x.dtype), w2, preferred_element_type=jnp.float32)  # [tN, H] f32
        # routing weight applied after the second matmul (matches torch order, f32)
        o_ref[...] += ce * y


def moe_apply(x_pad, w1_blk, w2, coef, grp_tile, grp_exp, grp_first, grp_valid,
              *, token_tile, vmem_limit_bytes):
    """Grouped-matmul expert FFN: out[n] = coef[n, e(n)] * (GELU(x[n] @ W1[e]) @ W2[e])."""
    Np, H = x_pad.shape
    E, n_it, _, tI = w1_blk.shape
    tN = token_tile
    G = grp_tile.shape[0]

    def x_map(g, it, tiles, exps, first, valid):
        return (tiles[g], 0)

    def w1_map(g, it, tiles, exps, first, valid):
        v = valid[g]
        # freeze the inner-tile index for invalid (padding) groups -> DMA elided
        return (exps[g], v * it + (1 - v) * (n_it - 1), 0, 0)

    def w2_map(g, it, tiles, exps, first, valid):
        v = valid[g]
        return (exps[g], v * it + (1 - v) * (n_it - 1), 0)

    def coef_map(g, it, tiles, exps, first, valid):
        return (tiles[g], 0)

    def out_map(g, it, tiles, exps, first, valid):
        return (tiles[g], 0)

    return pl.pallas_call(
        _moe_kernel,
        out_shape=jax.ShapeDtypeStruct((Np, H), jnp.float32),
        grid_spec=pltpu.PrefetchScalarGridSpec(
            num_scalar_prefetch=4,
            grid=(G, n_it),
            in_specs=[
                # x tile: resident across inner tiles and consecutive same-tile groups
                pl.BlockSpec((tN, H), x_map),
                # contiguous pre-blocked W1 tile, streamed only for active groups
                pl.BlockSpec((1, 1, H, tI), w1_map),
                pl.BlockSpec((1, tI, H), w2_map),
                # routing coefficients, resident per token tile; expert column picked in-kernel
                pl.BlockSpec((tN, E), coef_map),
            ],
            out_specs=pl.BlockSpec((tN, H), out_map),
        ),
        compiler_params=pltpu.CompilerParams(
            # the group axis carries a resident-output accumulation dependency -> "arbitrary"
            # TODO(synk): recover 2-TensorCore parallelism on v7x via core_map / per-core groups.
            dimension_semantics=("arbitrary", "arbitrary"),
            vmem_limit_bytes=vmem_limit_bytes,
        ),
    )(grp_tile, grp_exp, grp_first, grp_valid, x_pad, w1_blk, w2, coef)


# ------------------------- Expert-choice routing (glue) -----------------------


def expert_choice_route(probs, capacity_factor):
    """Vectorized equivalent of the PyTorch sequential assignment loop.

    A token selected by >=1 expert is assigned to the expert with the largest affinity
    (ties -> lowest expert index, matching the torch loop which only reassigns on
    strictly-greater score). Unselected tokens fall back to their argmax expert.
    """
    N, E = probs.shape
    k = min(N, max(1, int(N * capacity_factor / E)))

    affinities = probs.T                                  # [E, N]
    vals, idx = lax.top_k(affinities, k)                  # [E, k]

    masked = jnp.full((E, N), -jnp.inf, dtype=probs.dtype)
    rows = jnp.arange(E)[:, None]
    masked = masked.at[rows, idx].set(vals)               # prob if selected else -inf
    masked_t = masked.T                                   # [N, E]

    has_sel = jnp.any(jnp.isfinite(masked_t), axis=1)
    chosen = jnp.where(
        has_sel, jnp.argmax(masked_t, axis=1), jnp.argmax(probs, axis=1)
    ).astype(jnp.int32)
    weight = jnp.take_along_axis(probs, chosen[:, None], axis=1)[:, 0]
    return weight, chosen


# ------------------------------- MoE layer ------------------------------------


class ExpertChoiceMoELayerPallas:
    def __init__(self, hidden_size, intermediate_size, num_experts,
                 capacity_factor=1.0, expert_dropout=0.0, key=None,
                 compute_dtype=jnp.bfloat16, token_tile=256):
        self.hidden_size = hidden_size
        self.intermediate_size = intermediate_size
        self.num_experts = num_experts
        self.capacity_factor = capacity_factor
        self.expert_dropout = expert_dropout   # 0.0 -> identity (matches eval / p=0)
        self.compute_dtype = compute_dtype     # expert FFN dtype; router always stays f32

        # --- generation-aware tiling / VMEM accounting ---
        self._vmem_cap = _vmem_capacity_bytes()
        budget = int(0.6 * self._vmem_cap)
        csize = jnp.dtype(compute_dtype).itemsize
        tok = max(16, _round_up(int(token_tile), 16))
        while True:
            ti = _pick_inner_tile(intermediate_size, hidden_size, tok, num_experts,
                                  csize, budget)
            if _moe_step_vmem(tok, hidden_size, ti, num_experts, csize) <= budget or tok <= 64:
                break
            tok //= 2
        self.token_tile = tok
        self.inner_tile = ti
        self.n_inner_tiles = intermediate_size // ti
        self.moe_vmem_limit = int(min(
            self._vmem_cap,
            max(32 * _MIB, 2 * _moe_step_vmem(tok, hidden_size, ti, num_experts, csize))))

        # --- parameters (torch nn.Linear init: U(-1/sqrt(fan_in), 1/sqrt(fan_in))) ---
        key = jax.random.PRNGKey(0) if key is None else key
        kg, k1, k2 = jax.random.split(key, 3)
        bg = 1.0 / math.sqrt(hidden_size)
        b1 = 1.0 / math.sqrt(hidden_size)
        b2 = 1.0 / math.sqrt(intermediate_size)
        # gate: torch layout [E, H]; pre-transposed and lane-padded to [H, Ep]
        self.wg = jax.random.uniform(kg, (num_experts, hidden_size),
                                     minval=-bg, maxval=bg, dtype=jnp.float32)
        Ep = _round_up(num_experts, _LANE)
        self.wg_t_pad = jnp.pad(self.wg.T, ((0, 0), (0, Ep - num_experts)))
        # experts: f32 masters (for reference checks) + compute-dtype kernel copies
        self.w1 = jax.random.uniform(k1, (num_experts, hidden_size, intermediate_size),
                                     minval=-b1, maxval=b1, dtype=jnp.float32)
        self.w2 = jax.random.uniform(k2, (num_experts, intermediate_size, hidden_size),
                                     minval=-b2, maxval=b2, dtype=jnp.float32)
        # W1 pre-blocked to [E, n_it, H, tI] so each weight tile is a contiguous DMA
        self.w1_blk = (self.w1.reshape(num_experts, hidden_size, self.n_inner_tiles, ti)
                       .transpose(0, 2, 1, 3).astype(compute_dtype))
        self.w2_c = self.w2.astype(compute_dtype)

        self._fwd = jax.jit(self._forward)

    def __call__(self, x):
        return self._fwd(x)

    def _forward(self, x):
        B, S, H = x.shape
        E = self.num_experts
        x_flat = x.reshape(-1, H).astype(jnp.float32)
        N = x_flat.shape[0]

        # --- router (Pallas, f32 so routing decisions are exact) ---
        probs, logits = gate_softmax(x_flat, self.wg_t_pad, E)
        weight, chosen = expert_choice_route(probs, self.capacity_factor)

        # --- dispatch prep (plain-JAX glue): sort tokens by assigned expert ---
        tN = min(self.token_tile, _round_up(N, 16))
        Np = _round_up(N, tN)
        n_tiles = Np // tN
        pad = Np - N

        perm = jnp.argsort(chosen)
        inv_perm = jnp.argsort(perm)
        x_sorted = jnp.take(x_flat, perm, axis=0)
        chosen_sorted = jnp.take(chosen, perm)
        weight_sorted = jnp.take(weight, perm)
        # TODO(synk): fuse the token gather / inverse permutation into the kernels
        # (scalar-prefetched row indices) to avoid the extra HBM round trips.

        x_pad = jnp.pad(x_sorted, ((0, pad), (0, 0)))
        chosen_pad = jnp.pad(chosen_sorted, (0, pad), constant_values=-1)
        weight_pad = jnp.pad(weight_sorted, (0, pad))

        eids = jnp.arange(E, dtype=chosen_pad.dtype)
        # routing coefficients, tokens-major [Np, E] (resident per token tile in the kernel)
        coef = (chosen_pad[:, None] == eids[None, :]).astype(jnp.float32) * weight_pad[:, None]

        # --- grouped-matmul schedule: one group per active (token_tile, expert) pair.
        # With tokens sorted by expert there are at most n_tiles + E - 1 such pairs.
        active = jnp.any(chosen_pad.reshape(n_tiles, tN)[:, :, None] == eids[None, None, :],
                         axis=1)                                            # [n_tiles, E]
        G = n_tiles + E - 1
        flat = active.reshape(-1)                                           # (tile, expert) order
        pos = jnp.cumsum(flat.astype(jnp.int32)) - 1
        n_act = pos[-1] + 1
        safe_pos = jnp.where(flat, pos, G)                                  # inactive -> sentinel slot
        tile_ids = (jnp.arange(n_tiles * E, dtype=jnp.int32) // E)
        exp_ids = (jnp.arange(n_tiles * E, dtype=jnp.int32) % E)
        last_tile = jnp.int32(n_tiles - 1)
        last_exp = chosen_sorted[N - 1].astype(jnp.int32)
        # padding groups repeat the last real (tile, expert) so their DMAs are elided
        grp_tile = jnp.full((G + 1,), last_tile, jnp.int32).at[safe_pos].set(
            tile_ids, mode="drop")[:G]
        grp_exp = jnp.full((G + 1,), last_exp, jnp.int32).at[safe_pos].set(
            exp_ids, mode="drop")[:G]
        prev_tile = jnp.concatenate([jnp.full((1,), -1, jnp.int32), grp_tile[:-1]])
        grp_first = (grp_tile != prev_tile).astype(jnp.int32)
        grp_valid = (jnp.arange(G, dtype=jnp.int32) < n_act).astype(jnp.int32)

        # --- expert FFN (Pallas) ---
        out_pad = moe_apply(x_pad.astype(self.compute_dtype), self.w1_blk, self.w2_c, coef,
                            grp_tile, grp_exp, grp_first, grp_valid,
                            token_tile=tN, vmem_limit_bytes=self.moe_vmem_limit)
        out_flat = jnp.take(out_pad[:N], inv_perm, axis=0)
        # TODO(synk): nn.Dropout(p=expert_dropout) omitted (identity for p=0 / eval mode).
        out = out_flat.reshape(B, S, H)

        aux = {
            "router_aux": {"router_logits": logits, "router_probs": probs},
            "expert_indices": chosen.reshape(B, S),
            "routing_weights": weight.reshape(B, S),
        }
        return out, aux


# ------------------------------- reference ------------------------------------

_erf_np = np.vectorize(math.erf)


def reference_forward_np(x, wg, w1, w2, capacity_factor, probs=None):
    """Literal NumPy port of the PyTorch ExpertChoiceMoELayer forward (loops and all).

    If `probs` is given, it is used in place of the recomputed softmax (so the
    discrete routing decisions are driven by the same probabilities as the kernel,
    decoupling the check from tiny matmul-precision differences)."""
    x = np.asarray(x, np.float32)
    wg = np.asarray(wg, np.float32)
    w1 = np.asarray(w1, np.float32)
    w2 = np.asarray(w2, np.float32)
    B, S, H = x.shape
    E = wg.shape[0]
    xf = x.reshape(-1, H)
    N = xf.shape[0]

    logits = xf @ wg.T
    if probs is None:
        z = logits - logits.max(axis=1, keepdims=True)
        ez = np.exp(z)
        probs = ez / ez.sum(axis=1, keepdims=True)
    else:
        probs = np.asarray(probs, np.float32)

    k = max(1, int(N * capacity_factor / E))
    aff = probs.T                                 # [E, N]
    topk_idx = np.argsort(-aff, axis=1)[:, :k]

    token_to_expert = np.full(N, -1, np.int64)
    token_score = np.zeros(N, np.float32)
    for e in range(E):
        for t in topk_idx[e]:
            s = aff[e, t]
            if token_to_expert[t] == -1 or s > token_score[t]:
                token_to_expert[t] = e
                token_score[t] = s
    for t in np.nonzero(token_to_expert == -1)[0]:
        e = int(np.argmax(probs[t]))
        token_to_expert[t] = e
        token_score[t] = probs[t, e]

    out = np.zeros_like(xf)
    for e in range(E):
        mask = token_to_expert == e
        if not mask.any():
            continue
        xi = xf[mask]
        h = xi @ w1[e]
        h = 0.5 * h * (1.0 + _erf_np(h / math.sqrt(2.0)))   # exact GELU
        y = h @ w2[e]
        out[mask] += y * token_score[mask][:, None]
    return out.reshape(B, S, H)


if __name__ == "__main__":
    B, S, H, I, E = 2, 8, 32, 64, 4
    key = jax.random.PRNGKey(0)
    kx, kp = jax.random.split(key)
    x = jax.random.normal(kx, (B, S, H), dtype=jnp.float32)

    # --- f32 expert path ---
    layer_f32 = ExpertChoiceMoELayerPallas(H, I, E, capacity_factor=1.0, key=kp,
                                           compute_dtype=jnp.float32)
    out_f32, aux = layer_f32(x)
    out_f32 = jax.block_until_ready(out_f32)
    assert out_f32.shape == (B, S, H)
    assert aux["expert_indices"].shape == (B, S)

    # (1) gate kernel check: Pallas probs/logits vs NumPy softmax(x @ Wg^T)
    xf_np = np.asarray(x, np.float32).reshape(-1, H)
    logits_np = xf_np @ np.asarray(layer_f32.wg).T
    z = logits_np - logits_np.max(axis=1, keepdims=True)
    probs_np = np.exp(z)
    probs_np /= probs_np.sum(axis=1, keepdims=True)
    probs_pallas = np.asarray(aux["router_aux"]["router_probs"], np.float32)
    logits_pallas = np.asarray(aux["router_aux"]["router_logits"], np.float32)
    assert np.max(np.abs(logits_pallas - logits_np)) < 2e-2
    assert np.max(np.abs(probs_pallas - probs_np)) < 2e-2

    # (2) end-to-end check (routing logic + dispatch + expert FFN) using the same probs
    ref = reference_forward_np(np.asarray(x), np.asarray(layer_f32.wg),
                               np.asarray(layer_f32.w1), np.asarray(layer_f32.w2),
                               1.0, probs=probs_pallas)
    err_f32 = float(np.max(np.abs(np.asarray(out_f32) - ref)))
    assert err_f32 < 2e-2, f"f32 max abs err {err_f32}"

    # --- bf16 expert path (default; router stays f32, f32 accumulation) ---
    layer_bf16 = ExpertChoiceMoELayerPallas(H, I, E, capacity_factor=1.0, key=kp)
    out_bf16, aux_bf16 = layer_bf16(x)
    out_bf16 = jax.block_until_ready(out_bf16)
    probs_bf16 = np.asarray(aux_bf16["router_aux"]["router_probs"], np.float32)
    ref_bf16 = reference_forward_np(np.asarray(x), np.asarray(layer_bf16.wg),
                                    np.asarray(layer_bf16.w1), np.asarray(layer_bf16.w2),
                                    1.0, probs=probs_bf16)
    err_bf16 = float(np.max(np.abs(np.asarray(out_bf16, np.float32) - ref_bf16)))
    assert err_bf16 < 1e-1, f"bf16 max abs err {err_bf16}"

    print("KERNEL_OK")
</pallas_src>

<mosaic_0001>
module attributes {stable_mosaic.version = 11 : i64} {
  func.func @_gate_kernel(%arg0: i32, %arg1: memref<16x32xf32, #tpu.memory_space<vmem>>, %arg2: memref<32x128xf32, #tpu.memory_space<vmem>>, %arg3: memref<16x128xf32, #tpu.memory_space<vmem>>, %arg4: memref<16x128xf32, #tpu.memory_space<vmem>>) attributes {dimension_semantics = [#tpu.dimension_semantics<parallel>], iteration_bounds = array<i64: 1>, scalar_prefetch = 0 : i64, scratch_operands = 0 : i64, tpu.core_type = #tpu.core_type<tc>, window_params = [{transform_indices = @transform_0, window_bounds = array<i64: 16, 32>}, {pipeline_mode = #tpu.pipeline_mode<synchronous>, transform_indices = @transform_1, window_bounds = array<i64: 32, 128>}, {transform_indices = @transform_2, window_bounds = array<i64: 16, 128>}, {transform_indices = @transform_3, window_bounds = array<i64: 16, 128>}]} {
    %c0 = arith.constant 0 : index
    %c0_0 = arith.constant 0 : index
    %0 = vector.load %arg1[%c0, %c0_0] : memref<16x32xf32, #tpu.memory_space<vmem>>, vector<16x32xf32>
    %c0_1 = arith.constant 0 : index
    %c0_2 = arith.constant 0 : index
    %1 = vector.load %arg2[%c0_1, %c0_2] : memref<32x128xf32, #tpu.memory_space<vmem>>, vector<32x128xf32>
    %cst = arith.constant dense<0.000000e+00> : vector<16x128xf32>
    %2 = tpu.matmul %0, %1, %cst {dimension_numbers = #tpu.dot_dimension_numbers<[1], [0], [0], [1], [0, 0, 1, 1], [], []>} : vector<16x32xf32>, vector<32x128xf32>, vector<16x128xf32> -> vector<16x128xf32>
    %c0_3 = arith.constant 0 : index
    %c0_4 = arith.constant 0 : index
    %3 = vector.load %arg4[%c0_3, %c0_4] : memref<16x128xf32, #tpu.memory_space<vmem>>, vector<16x128xf32>
    tpu.vector_store %arg4[%c0_3, %c0_4], %2 {strides = array<i32>} : memref<16x128xf32, #tpu.memory_space<vmem>>, vector<16x128xf32>,
    %4 = tpu.iota {dimensions = array<i32: 1>} : vector<16x128xi32>
    %c4_i32 = arith.constant 4 : i32
    %5 = vector.broadcast %c4_i32 : i32 to vector<16x128xi32>
    %6 = arith.cmpi slt, %4, %5 : vector<16x128xi32>
    %cst_5 = arith.constant -1.000000e+30 : f32
    %7 = vector.broadcast %cst_5 : f32 to vector<16x128xf32>
    %8 = arith.select %6, %2, %7 : vector<16x128xi1>, vector<16x128xf32>
    %cst_6 = arith.constant dense<0xFF800000> : vector<16xf32>
    %9 = vector.multi_reduction <maximumf>, %8, %cst_6 [1] : vector<16x128xf32> to vector<16xf32>
    %10 = vector.shape_cast %9 : vector<16xf32> to vector<16x1xf32>
    %11 = vector.broadcast %10 : vector<16x1xf32> to vector<16x128xf32>
    %12 = arith.subf %8, %11 : vector<16x128xf32>
    %13 = math.exp %12 : vector<16x128xf32>
    %cst_7 = arith.constant dense<0.000000e+00> : vector<16xf32>
    %14 = vector.multi_reduction <add>, %13, %cst_7 [1] : vector<16x128xf32> to vector<16xf32>
    %15 = vector.shape_cast %14 : vector<16xf32> to vector<16x1xf32>
    %16 = vector.broadcast %15 : vector<16x1xf32> to vector<16x128xf32>
    %17 = arith.divf %13, %16 : vector<16x128xf32>
    %c0_8 = arith.constant 0 : index
    %c0_9 = arith.constant 0 : index
    %18 = vector.load %arg3[%c0_8, %c0_9] : memref<16x128xf32, #tpu.memory_space<vmem>>, vector<16x128xf32>
    tpu.vector_store %arg3[%c0_8, %c0_9], %17 {strides = array<i32>} : memref<16x128xf32, #tpu.memory_space<vmem>>, vector<16x128xf32>,
    return
  }
  func.func @transform_0(%arg0: i32) -> (i32, i32) {
    %c0_i32 = arith.constant 0 : i32
    %c0_i32_0 = arith.constant 0 : i32
    return %arg0, %c0_i32 : i32, i32
  }
  func.func @transform_1(%arg0: i32) -> (i32, i32) {
    %c0_i32 = arith.constant 0 : i32
    %c0_i32_0 = arith.constant 0 : i32
    %c0_i32_1 = arith.constant 0 : i32
    return %c0_i32, %c0_i32_0 : i32, i32
  }
  func.func @transform_2(%arg0: i32) -> (i32, i32) {
    %c0_i32 = arith.constant 0 : i32
    %c0_i32_0 = arith.constant 0 : i32
    return %arg0, %c0_i32 : i32, i32
  }
  func.func @transform_3(%arg0: i32) -> (i32, i32) {
    %c0_i32 = arith.constant 0 : i32
    %c0_i32_0 = arith.constant 0 : i32
    return %arg0, %c0_i32 : i32, i32
  }
}

module attributes {stable_mosaic.version = 11 : i64} {
  func.func @_moe_kernel(%arg0: i32, %arg1: i32, %arg2: memref<4xi32, #tpu.memory_space<smem>>, %arg3: memref<4xi32, #tpu.memory_space<smem>>, %arg4: memref<4xi32, #tpu.memory_space<smem>>, %arg5: memref<4xi32, #tpu.memory_space<smem>>, %arg6: memref<16x32xf32, #tpu.memory_space<vmem>>, %arg7: memref<1x1x32x64xf32, #tpu.memory_space<vmem>>, %arg8: memref<1x64x32xf32, #tpu.memory_space<vmem>>, %arg9: memref<16x4xf32, #tpu.memory_space<vmem>>, %arg10: memref<16x32xf32, #tpu.memory_space<vmem>>) attributes {dimension_semantics = [#tpu.dimension_semantics<arbitrary>, #tpu.dimension_semantics<arbitrary>], iteration_bounds = array<i64: 4, 1>, scalar_prefetch = 4 : i64, scratch_operands = 0 : i64, tpu.core_type = #tpu.core_type<tc>, window_params = [{transform_indices = @transform_0, window_bounds = array<i64: 16, 32>}, {transform_indices = @transform_1, window_bounds = array<i64: 1, 1, 32, 64>}, {transform_indices = @transform_2, window_bounds = array<i64: 1, 64, 32>}, {transform_indices = @transform_3, window_bounds = array<i64: 16, 4>}, {transform_indices = @transform_4, window_bounds = array<i64: 16, 32>}]} {
    %0 = arith.index_cast %arg0 : i32 to index
    %1 = memref.load %arg4[%0] : memref<4xi32, #tpu.memory_space<smem>>
    %c0_i32 = arith.constant 0 : i32
    %2 = arith.cmpi ne, %1, %c0_i32 : i32
    %c0_i32_0 = arith.constant 0 : i32
    %3 = arith.cmpi eq, %arg1, %c0_i32_0 : i32
    %4 = arith.andi %2, %3 : i1
    %5 = arith.extui %4 : i1 to i32
    %c0_i32_1 = arith.constant 0 : i32
    %6 = arith.cmpi ne, %5, %c0_i32_1 : i32
    scf.if %6 {
      %cst = arith.constant 0.000000e+00 : f32
      %12 = vector.broadcast %cst : f32 to vector<16x32xf32>
      %c0 = arith.constant 0 : index
      %c0_4 = arith.constant 0 : index
      %13 = vector.load %arg10[%c0, %c0_4] : memref<16x32xf32, #tpu.memory_space<vmem>>, vector<16x32xf32>
      tpu.vector_store %arg10[%c0, %c0_4], %12 {strides = array<i32>} : memref<16x32xf32, #tpu.memory_space<vmem>>, vector<16x32xf32>,
    } else {
    }
    %7 = arith.index_cast %arg0 : i32 to index
    %8 = memref.load %arg5[%7] : memref<4xi32, #tpu.memory_space<smem>>
    %c0_i32_2 = arith.constant 0 : i32
    %9 = arith.cmpi ne, %8, %c0_i32_2 : i32
    %10 = arith.extui %9 : i1 to i32
    %c0_i32_3 = arith.constant 0 : i32
    %11 = arith.cmpi ne, %10, %c0_i32_3 : i32
    scf.if %11 {
      %12 = arith.index_cast %arg0 : i32 to index
      %13 = memref.load %arg3[%12] : memref<4xi32, #tpu.memory_space<smem>>
      %c0 = arith.constant 0 : index
      %c0_4 = arith.constant 0 : index
      %14 = vector.load %arg6[%c0, %c0_4] : memref<16x32xf32, #tpu.memory_space<vmem>>, vector<16x32xf32>
      %c0_5 = arith.constant 0 : index
      %c0_6 = arith.constant 0 : index
      %c0_7 = arith.constant 0 : index
      %c0_8 = arith.constant 0 : index
      %15 = vector.load %arg7[%c0_5, %c0_6, %c0_7, %c0_8] : memref<1x1x32x64xf32, #tpu.memory_space<vmem>>, vector<1x1x32x64xf32>
      %16 = vector.shape_cast %15 : vector<1x1x32x64xf32> to vector<32x64xf32>
      %c0_9 = arith.constant 0 : index
      %c0_10 = arith.constant 0 : index
      %c0_11 = arith.constant 0 : index
      %17 = vector.load %arg8[%c0_9, %c0_10, %c0_11] : memref<1x64x32xf32, #tpu.memory_space<vmem>>, vector<1x64x32xf32>
      %18 = vector.shape_cast %17 : vector<1x64x32xf32> to vector<64x32xf32>
      %c0_12 = arith.constant 0 : index
      %c0_13 = arith.constant 0 : index
      %19 = vector.load %arg9[%c0_12, %c0_13] : memref<16x4xf32, #tpu.memory_space<vmem>>, vector<16x4xf32>
      %20 = tpu.iota {dimensions = array<i32: 1>} : vector<16x4xi32>
      %21 = vector.broadcast %13 : i32 to vector<16x4xi32>
      %22 = arith.cmpi eq, %20, %21 : vector<16x4xi32>
      %cst = arith.constant 0.000000e+00 : f32
      %23 = vector.broadcast %cst : f32 to vector<16x4xf32>
      %24 = arith.select %22, %19, %23 : vector<16x4xi1>, vector<16x4xf32>
      %cst_14 = arith.constant dense<0.000000e+00> : vector<16xf32>
      %25 = vector.multi_reduction <add>, %24, %cst_14 [1] : vector<16x4xf32> to vector<16xf32>
      %26 = vector.shape_cast %25 : vector<16xf32> to vector<16x1xf32>
      %cst_15 = arith.constant dense<0.000000e+00> : vector<16x64xf32>
      %27 = tpu.matmul %14, %16, %cst_15 {dimension_numbers = #tpu.dot_dimension_numbers<[1], [0], [0], [1], [0, 0, 1, 1], [], []>} : vector<16x32xf32>, vector<32x64xf32>, vector<16x64xf32> -> vector<16x64xf32>
      %cst_16 = arith.constant 5.000000e-01 : f32
      %28 = vector.broadcast %cst_16 : f32 to vector<16x64xf32>
      %29 = arith.mulf %28, %27 : vector<16x64xf32>
      %cst_17 = arith.constant 0.707106769 : f32
      %30 = vector.broadcast %cst_17 : f32 to vector<16x64xf32>
      %31 = arith.mulf %27, %30 : vector<16x64xf32>
      %32 = math.erf %31 : vector<16x64xf32>
      %cst_18 = arith.constant 1.000000e+00 : f32
      %33 = vector.broadcast %cst_18 : f32 to vector<16x64xf32>
      %34 = arith.addf %33, %32 : vector<16x64xf32>
      %35 = arith.mulf %29, %34 : vector<16x64xf32>
      %cst_19 = arith.constant dense<0.000000e+00> : vector<16x32xf32>
      %36 = tpu.matmul %35, %18, %cst_19 {dimension_numbers = #tpu.dot_dimension_numbers<[1], [0], [0], [1], [0, 0, 1, 1], [], []>} : vector<16x64xf32>, vector<64x32xf32>, vector<16x32xf32> -> vector<16x32xf32>
      %c0_20 = arith.constant 0 : index
      %c0_21 = arith.constant 0 : index
      %37 = vector.load %arg10[%c0_20, %c0_21] : memref<16x32xf32, #tpu.memory_space<vmem>>, vector<16x32xf32>
      %38 = vector.broadcast %26 : vector<16x1xf32> to vector<16x32xf32>
      %39 = arith.mulf %38, %36 : vector<16x32xf32>
      %40 = arith.addf %37, %39 : vector<16x32xf32>
      %c0_22 = arith.constant 0 : index
      %c0_23 = arith.constant 0 : index
      %41 = vector.load %arg10[%c0_22, %c0_23] : memref<16x32xf32, #tpu.memory_space<vmem>>, vector<16x32xf32>
      tpu.vector_store %arg10[%c0_22, %c0_23], %40 {strides = array<i32>} : memref<16x32xf32, #tpu.memory_space<vmem>>, vector<16x32xf32>,
    } else {
    }
    return
  }
  func.func @transform_0(%arg0: i32, %arg1: i32, %arg2: memref<4xi32, #tpu.memory_space<smem>>, %arg3: memref<4xi32, #tpu.memory_space<smem>>, %arg4: memref<4xi32, #tpu.memory_space<smem>>, %arg5: memref<4xi32, #tpu.memory_space<smem>>) -> (i32, i32) {
    %0 = arith.index_cast %arg0 : i32 to index
    %1 = memref.load %arg2[%0] : memref<4xi32, #tpu.memory_space<smem>>
    %c0_i32 = arith.constant 0 : i32
    %c0_i32_0 = arith.constant 0 : i32
    return %1, %c0_i32 : i32, i32
  }
  func.func @transform_1(%arg0: i32, %arg1: i32, %arg2: memref<4xi32, #tpu.memory_space<smem>>, %arg3: memref<4xi32, #tpu.memory_space<smem>>, %arg4: memref<4xi32, #tpu.memory_space<smem>>, %arg5: memref<4xi32, #tpu.memory_space<smem>>) -> (i32, i32, i32, i32) {
    %0 = arith.index_cast %arg0 : i32 to index
    %1 = memref.load %arg5[%0] : memref<4xi32, #tpu.memory_space<smem>>
    %2 = arith.index_cast %arg0 : i32 to index
    %3 = memref.load %arg3[%2] : memref<4xi32, #tpu.memory_space<smem>>
    %4 = arith.muli %1, %arg1 : i32
    %c1_i32 = arith.constant 1 : i32
    %5 = arith.subi %c1_i32, %1 : i32
    %c0_i32 = arith.constant 0 : i32
    %6 = arith.muli %5, %c0_i32 : i32
    %7 = arith.addi %4, %6 : i32
    %c0_i32_0 = arith.constant 0 : i32
    %c0_i32_1 = arith.constant 0 : i32
    %c0_i32_2 = arith.constant 0 : i32
    return %3, %7, %c0_i32_0, %c0_i32_1 : i32, i32, i32, i32
  }
  func.func @transform_2(%arg0: i32, %arg1: i32, %arg2: memref<4xi32, #tpu.memory_space<smem>>, %arg3: memref<4xi32, #tpu.memory_space<smem>>, %arg4: memref<4xi32, #tpu.memory_space<smem>>, %arg5: memref<4xi32, #tpu.memory_space<smem>>) -> (i32, i32, i32) {
    %0 = arith.index_cast %arg0 : i32 to index
    %1 = memref.load %arg5[%0] : memref<4xi32, #tpu.memory_space<smem>>
    %2 = arith.index_cast %arg0 : i32 to index
    %3 = memref.load %arg3[%2] : memref<4xi32, #tpu.memory_space<smem>>
    %4 = arith.muli %1, %arg1 : i32
    %c1_i32 = arith.constant 1 : i32
    %5 = arith.subi %c1_i32, %1 : i32
    %c0_i32 = arith.constant 0 : i32
    %6 = arith.muli %5, %c0_i32 : i32
    %7 = arith.addi %4, %6 : i32
    %c0_i32_0 = arith.constant 0 : i32
    %c0_i32_1 = arith.constant 0 : i32
    return %3, %7, %c0_i32_0 : i32, i32, i32
  }
  func.func @transform_3(%arg0: i32, %arg1: i32, %arg2: memref<4xi32, #tpu.memory_space<smem>>, %arg3: memref<4xi32, #tpu.memory_space<smem>>, %arg4: memref<4xi32, #tpu.memory_space<smem>>, %arg5: memref<4xi32, #tpu.memory_space<smem>>) -> (i32, i32) {
    %0 = arith.index_cast %arg0 : i32 to index
    %1 = memref.load %arg2[%0] : memref<4xi32, #tpu.memory_space<smem>>
    %c0_i32 = arith.constant 0 : i32
    %c0_i32_0 = arith.constant 0 : i32
    return %1, %c0_i32 : i32, i32
  }
  func.func @transform_4(%arg0: i32, %arg1: i32, %arg2: memref<4xi32, #tpu.memory_space<smem>>, %arg3: memref<4xi32, #tpu.memory_space<smem>>, %arg4: memref<4xi32, #tpu.memory_space<smem>>, %arg5: memref<4xi32, #tpu.memory_space<smem>>) -> (i32, i32) {
    %0 = arith.index_cast %arg0 : i32 to index
    %1 = memref.load %arg2[%0] : memref<4xi32, #tpu.memory_space<smem>>
    %c0_i32 = arith.constant 0 : i32
    %c0_i32_0 = arith.constant 0 : i32
    return %1, %c0_i32 : i32, i32
  }
}

</mosaic_0001>

<llo_original>
// kernel: _forward.2
$region0: #{_forward.2}
  #allocation0 [shape = 'u32[]', space=smem, size = 0x4, offset = 0x4, fixed_abs, tag = 'smem constant byte address 0x4 - core index']
  #allocation1 [shape = 'u32[72,128]{1,0:T(1,128)}', space=vmem, size = 0x9000, scoped, tag = 'internal scratch']
  %s0 = inlined_call_operand.vmem [shape: f32[16,32], index: 0, kind: input, shape index: {}]
  %s1 = inlined_call_operand.hbm [shape: f32[32,128], index: 1, kind: input, shape index: {}]
  %s2 = inlined_call_operand.vmem [shape: f32[16,128], index: 2, kind: output, shape index: {0}]
  %s3 = inlined_call_operand.vmem [shape: f32[16,128], index: 3, kind: output, shape index: {1}]
  %4 = xla_tuple %s2, %s3
  %s5 = sld [smem:[#allocation0]]
  $region30: #{_forward.2} parent=0
    _
  %s7 = ssub.s32 1, %s5
  %s8 = scalar_select 0, %s7, %s5
  $region1: #{_forward.2} parent=0
    #allocation2 [shape = 'u8[16384]{0}', space=vmem, size = 0x4000, scoped, tag = 'input window, operand 1, single buffered']
    #allocation3 [shape = 's32[1]{0}', space=sflag, size = 0x4, scoped, tag = 'scoped memory for _forward.2']
    %9 = vsyncpa [#allocation3], 0
    // Predicated region
    $region2: #{_forward.2} parent=1 // pred_check
      _
    $region3: #{_forward.2} parent=1 // pred_check_branch
      %11 = sbr.rel (0) target = $region5
    $region4: #{_forward.2} parent=1 // pred_region
      _
    $region5: #{_forward.2} parent=1 // pred_fallthru
      _
    // Predicated region
    $region6: #{_forward.2} parent=1 // pred_check
      _
    $region7: #{_forward.2} parent=1 // pred_check_branch
      %13 = sbr.rel (0) target = $region9
    $region8: #{_forward.2} parent=1 // pred_region
      %15 = vsyncadd [#allocation3], 0
      %s16 = sshll.u32 %s1, 4
      %s17 = int_to_ptr.hbm [resolvable:$true] %s16
      %s18 = sshll.u32 [#allocation2], 4
      %s19 = int_to_ptr.vmem [resolvable:$true] %s18
      %24 = dma.hbm_to_vmem [thread:$0]  %s17, 512, %s19, [#allocation3], 128, 128, 8
    $region9: #{_forward.2} parent=1 // pred_fallthru
      _
    // Predicated region
    $region10: #{_forward.2} parent=1 // pred_check
      _
    $region11: #{_forward.2} parent=1 // pred_check_branch
      %26 = sbr.rel (0) target = $region13
    $region12: #{_forward.2} parent=1 // pred_region
      %28 = dma.done [#allocation3], 512
    $region13: #{_forward.2} parent=1 // pred_fallthru
      _
    %v29 = vld [vmem:[%s0] sm:$0xff]
    %v30 = vld [vmem:[%s0 + $0x8] sm:$0xff]
    %v31 = vld [vmem:[#allocation2] sm:$0xff]
    %v32 = vld [vmem:[#allocation2 + $0x8] sm:$0xff]
    %v33 = vld [vmem:[#allocation2 + $0x10] sm:$0xff]
    %v34 = vld [vmem:[#allocation2 + $0x18] sm:$0xff]
    %vm35 = vcmask 261120
    %v37 = vsel %vm35, %v29, 0
    %v40 = vsel %vm35, %v30, 0
    %42 = vmatpush.msra.mxu0 0.0
    %43 = vmatpush.msra.mxu0 0.0
    %44 = vmatpush.msra.mxu0 0.0
    %45 = vmatpush.msra.mxu0 0.0
    %46 = vmatpush.msra.mxu0 0.0
    %47 = vmatpush.msra.mxu0 0.0
    %48 = vmatpush.msra.mxu0 0.0
    %49 = vmatpush.msra.mxu0 0.0
    %50 = vmatpush.msra.mxu0 0.0
    %51 = vmatpush.msra.mxu0 0.0
    %52 = vmatpush.msra.mxu0 0.0
    %53 = vmatpush.msra.mxu0 0.0
    %54 = vmatpush.msra.mxu0 %v34
    %55 = vmatpush.msra.mxu0 %v33
    %56 = vmatpush.msra.mxu0 %v32
    %57 = vmatpush.msra.mxu0 %v31
    %58 = vmatmul.f32.gmra.mxu0 %v37
    %v59 = vpop.f32.mrf.mxu0
    %v60 = vadd.f32 0.0, %v59
    %61 = vmatmul.f32.gmra.mxu0 %v40
    %v62 = vpop.f32.mrf.mxu0
    %v63 = vadd.f32 0.0, %v62
    %64 = vdwg.mxu0
    %65 = vst [vmem:[%s3] sm:$0xff] %v60
    %66 = vst [vmem:[%s3 + $0x8] sm:$0xff] %v63
    %v67 = vlaneseq
    %v68 = vand.u32 %v67, 127
    %vm69 = vcmp.lt.s32.totalorder %v68, 4
    %v70 = vsel %vm69, %v60, -1e+30
    %v71 = vsel %vm69, %v63, -1e+30
    %72 = vmax.xlane.f32.xlu0 %v70
    %v73 = vpop.xlane.xlu0 %72
    %74 = vmax.xlane.f32.xlu0 %v71
    %v75 = vpop.xlane.xlu0 %74
    %v76 = vsub.f32 %v70, %v73
    %v77 = vsub.f32 %v71, %v75
    %v78 = vmul.f32 %v76, 1.442695
    %v79 = vpow.pop %v78
    %v80 = vmul.f32 %v77, 1.442695
    %v81 = vpow.pop %v80
    %82 = vadd.xlane.f32.xlu0 %v79
    %v83 = vpop.xlane.xlu0 %82
    %84 = vadd.xlane.f32.xlu0 %v81
    %v85 = vpop.xlane.xlu0 %84
    %v86 = vrcp.pop %v83
    %v87 = vmul.f32 %v83, %v86
    %v88 = vsub.f32 1.0, %v87
    %v89 = vmul.f32 %v86, %v88
    %v90 = vadd.f32 %v86, %v89
    %vm91 = vweird.f32 %v83
    %vm92 = vweird.f32 %v86
    %vm93 = vmor %vm91, %vm92
    %v94 = vsel %vm93, %v86, %v90
    %v95 = vand.u32 2147483647, %v83
    %vm96 = vcmp.eq.f32.partialorder %v95, 8.507059e+37
    %v97 = vand.u32 %v83, 2147483648
    %v98 = vor.u32 1.1754944e-38, %v97
    %v99 = vsel %vm96, %v98, %v94
    %v100 = vmul.f32 %v79, %v99
    %v101 = vrcp.pop %v85
    %v102 = vmul.f32 %v85, %v101
    %v103 = vsub.f32 1.0, %v102
    %v104 = vmul.f32 %v101, %v103
    %v105 = vadd.f32 %v101, %v104
    %vm106 = vweird.f32 %v85
    %vm107 = vweird.f32 %v101
    %vm108 = vmor %vm106, %vm107
    %v109 = vsel %vm108, %v101, %v105
    %v110 = vand.u32 2147483647, %v85
    %vm111 = vcmp.eq.f32.partialorder %v110, 8.507059e+37
    %v112 = vand.u32 %v85, 2147483648
    %v113 = vor.u32 1.1754944e-38, %v112
    %v114 = vsel %vm111, %v113, %v109
    %v115 = vmul.f32 %v81, %v114
    %116 = vst [vmem:[%s2] sm:$0xff] %v100
    %117 = vst [vmem:[%s2 + $0x8] sm:$0xff] %v115
    // Predicated region
    $region14: #{_forward.2} parent=1 // pred_check
      _
    $region15: #{_forward.2} parent=1 // pred_check_branch
      %119 = sbr.rel (0) target = $region17
    $region16: #{_forward.2} parent=1 // pred_region
      _
    $region17: #{_forward.2} parent=1 // pred_fallthru
      _
    // Predicated region
    $region18: #{_forward.2} parent=1 // pred_check
      _
    $region19: #{_forward.2} parent=1 // pred_check_branch
      %121 = sbr.rel (0) target = $region21
    $region20: #{_forward.2} parent=1 // pred_region
      _
    $region21: #{_forward.2} parent=1 // pred_fallthru
      _
    // Predicated region
    $region22: #{_forward.2} parent=1 // pred_check
      _
    $region23: #{_forward.2} parent=1 // pred_check_branch
      %123 = sbr.rel (0) target = $region25
    $region24: #{_forward.2} parent=1 // pred_region
      _
    $region25: #{_forward.2} parent=1 // pred_fallthru
      _
    // Predicated region
    $region26: #{_forward.2} parent=1 // pred_check
      _
    $region27: #{_forward.2} parent=1 // pred_check_branch
      %125 = sbr.rel (0) target = $region29
    $region28: #{_forward.2} parent=1 // pred_region
      _
    $region29: #{_forward.2} parent=1 // pred_fallthru
      _
    %126 = vsyncpa [#allocation3], 1

// kernel: _forward.3
$region0: #{_forward.3}
  #allocation0 [shape = 'u32[]', space=smem, size = 0x4, offset = 0x4, fixed_abs, tag = 'smem constant byte address 0x4 - core index']
  #allocation1 [shape = 'u32[72,128]{1,0:T(1,128)}', space=vmem, size = 0x9000, scoped, tag = 'internal scratch']
  #allocation2 [shape = 's32[1]{0}', space=sflag, size = 0x4, scoped, tag = 'scoped memory for _forward.3']
  #allocation3 [shape = 'u8[512]{0}', space=smem, size = 0x200, scoped, tag = 'prefetched SMEM operand 0']
  #allocation4 [shape = 'u8[512]{0}', space=smem, size = 0x200, scoped, tag = 'prefetched SMEM operand 1']
  #allocation5 [shape = 'u8[512]{0}', space=smem, size = 0x200, scoped, tag = 'prefetched SMEM operand 2']
  #allocation6 [shape = 'u8[512]{0}', space=smem, size = 0x200, scoped, tag = 'prefetched SMEM operand 3']
  %s0 = inlined_call_operand.vmem [shape: s32[4], index: 0, kind: input, shape index: {}]
  %s1 = inlined_call_operand.vmem [shape: s32[4], index: 1, kind: input, shape index: {}]
  %s2 = inlined_call_operand.vmem [shape: s32[4], index: 2, kind: input, shape index: {}]
  %s3 = inlined_call_operand.vmem [shape: s32[4], index: 3, kind: input, shape index: {}]
  %s4 = inlined_call_operand.vmem [shape: f32[16,32], index: 4, kind: input, shape index: {}]
  %s5 = inlined_call_operand.vmem [shape: f32[4,1,32,64], index: 5, kind: input, shape index: {}]
  %s6 = inlined_call_operand.vmem [shape: f32[4,64,32], index: 6, kind: input, shape index: {}]
  %s7 = inlined_call_operand.vmem [shape: f32[16,4], index: 7, kind: input, shape index: {}]
  %s8 = inlined_call_operand.vmem [shape: f32[16,32], index: 8, kind: output, shape index: {}]
  %s9 = sld [smem:[#allocation0]]
  $region57: #{_forward.3} parent=0
    _
  %s11 = ssub.s32 1, %s9
  %s12 = scalar_select 0, %s11, %s9
  %s14 = sshll.u32 %s0, 4
  %s15 = int_to_ptr.vmem [resolvable:$true] %s14
  %17 = dma.vmem_to_smem %s15, 16, [#allocation3], [#allocation2]
  %s19 = sshll.u32 %s1, 4
  %s20 = int_to_ptr.vmem [resolvable:$true] %s19
  %22 = dma.vmem_to_smem %s20, 16, [#allocation4], [#allocation2]
  %s24 = sshll.u32 %s2, 4
  %s25 = int_to_ptr.vmem [resolvable:$true] %s24
  %27 = dma.vmem_to_smem %s25, 16, [#allocation5], [#allocation2]
  %s29 = sshll.u32 %s3, 4
  %s30 = int_to_ptr.vmem [resolvable:$true] %s29
  %32 = dma.vmem_to_smem %s30, 16, [#allocation6], [#allocation2]
  %34 = dma.done [#allocation2], 64
  %35 = sfence
  loop: start=0, step=1, limit=6
  $region2: #{_forward.3} parent=0 // loop_pre_header
    _
  $region3: #{_forward.3} parent=0 // loop_header
    %s37 = sphi 0, %s41
    %p38 = scmp.ge.s32.totalorder %s37, 6
    %s44 = sphi 0, %s56
    %s45 = sphi 0, %s52
    %s46 = sphi 0, %s44
    %s47 = sphi 0, %s45
    %s48 = sphi 0, %s46
    %s49 = sphi 0, %s47
    %s61 = sphi 0, %s63
    %s64 = sphi 0, %s61
    %s65 = sphi 0, %s64
    %s81 = sphi 0, %s65
    %s95 = sphi 0, %s97
    %s98 = sphi 0, %s95
    %s99 = sphi 0, %s98
    %s115 = sphi 0, %s99
    %s129 = sphi 0, %s131
    %s132 = sphi 0, %s129
    %s133 = sphi 0, %s132
    %s149 = sphi 0, %s133
    %s157 = sphi 0, %s159
    %s160 = sphi 0, %s157
    %s161 = sphi 0, %s160
    %s177 = sphi 0, %s161
    %s185 = sphi 0, %s187
    %s188 = sphi 0, %s185
    %s189 = sphi 0, %s188
    %s205 = sphi 0, %s189
  $region4: #{_forward.3} parent=0 // loop_header_branch
    %40 = sbr.rel (%p38) target = $region8
  $region5: #{_forward.3} parent=0 // loop_body
    %s42 = ssub.s32 %s37, 1
    %s43 = ssub.s32 %s37, 2
    %s50 = sadd.s32 1, %s45
    %p51 = scmp.ge.s32.totalorder %s50, 1
    %s52 = scalar_select %p51, 0, %s50
    %s53 = sadd.s32 1, %s44
    %s54 = scalar_select %p51, %s53, %s44
    %p55 = scmp.ge.s32.totalorder %s54, 4
    %s56 = scalar_select %p55, 0, %s54
    %s57 = sld [smem:[#allocation3 + %s44]]
    %s58 = sld [smem:[#allocation3 + %s56]]
    %s59 = ssub.s32 %s57, %s58
    %p60 = scmp.eq.s32.totalorder %s59, 0
    %s62 = sadd.s32 %s61, 1
    %s63 = scalar_select %p60, %s61, %s62
    %p66 = pneg %p60
    %p67 = scmp.eq.s32.totalorder %s37, 3
    %p68 = por %p66, %p67
    %p69 = scmp.ne.s32.totalorder %s61, %s64
    %p70 = scmp.eq.s32.totalorder %s37, 0
    %p71 = por %p69, %p70
    %p72 = scmp.ne.s32.totalorder %s61, %s64
    %p73 = scmp.eq.s32.totalorder %s42, 3
    %p74 = por %p72, %p73
    %p75 = scmp.ne.s32.totalorder %s64, %s65
    %p76 = scmp.eq.s32.totalorder %s42, 0
    %p77 = por %p75, %p76
    %p78 = scmp.ne.s32.totalorder %s64, %s65
    %p79 = scmp.eq.s32.totalorder %s43, 3
    %p80 = por %p78, %p79
    %p82 = scmp.ne.s32.totalorder %s65, %s81
    %p83 = scmp.eq.s32.totalorder %s43, 0
    %p84 = por %p82, %p83
    %s85 = sld [smem:[#allocation6 + %s44]]
    %s86 = sld [smem:[#allocation4 + %s44]]
    %s87 = smul.u32 %s85, %s45
    %s88 = sld [smem:[#allocation6 + %s56]]
    %s89 = sld [smem:[#allocation4 + %s56]]
    %s90 = smul.u32 %s88, %s52
    %s91 = ssub.s32 %s86, %s89
    %s92 = ssub.s32 %s87, %s90
    %s93 = sor.u32 %s91, %s92
    %p94 = scmp.eq.s32.totalorder %s93, 0
    %s96 = sadd.s32 %s95, 1
    %s97 = scalar_select %p94, %s95, %s96
    %p100 = pneg %p94
    %p101 = scmp.eq.s32.totalorder %s37, 3
    %p102 = por %p100, %p101
    %p103 = scmp.ne.s32.totalorder %s95, %s98
    %p104 = scmp.eq.s32.totalorder %s37, 0
    %p105 = por %p103, %p104
    %p106 = scmp.ne.s32.totalorder %s95, %s98
    %p107 = scmp.eq.s32.totalorder %s42, 3
    %p108 = por %p106, %p107
    %p109 = scmp.ne.s32.totalorder %s98, %s99
    %p110 = scmp.eq.s32.totalorder %s42, 0
    %p111 = por %p109, %p110
    %p112 = scmp.ne.s32.totalorder %s98, %s99
    %p113 = scmp.eq.s32.totalorder %s43, 3
    %p114 = por %p112, %p113
    %p116 = scmp.ne.s32.totalorder %s99, %s115
    %p117 = scmp.eq.s32.totalorder %s43, 0
    %p118 = por %p116, %p117
    %s119 = sld [smem:[#allocation6 + %s44]]
    %s120 = sld [smem:[#allocation4 + %s44]]
    %s121 = smul.u32 %s119, %s45
    %s122 = sld [smem:[#allocation6 + %s56]]
    %s123 = sld [smem:[#allocation4 + %s56]]
    %s124 = smul.u32 %s122, %s52
    %s125 = ssub.s32 %s120, %s123
    %s126 = ssub.s32 %s121, %s124
    %s127 = sor.u32 %s125, %s126
    %p128 = scmp.eq.s32.totalorder %s127, 0
    %s130 = sadd.s32 %s129, 1
    %s131 = scalar_select %p128, %s129, %s130
    %p134 = pneg %p128
    %p135 = scmp.eq.s32.totalorder %s37, 3
    %p136 = por %p134, %p135
    %p137 = scmp.ne.s32.totalorder %s129, %s132
    %p138 = scmp.eq.s32.totalorder %s37, 0
    %p139 = por %p137, %p138
    %p140 = scmp.ne.s32.totalorder %s129, %s132
    %p141 = scmp.eq.s32.totalorder %s42, 3
    %p142 = por %p140, %p141
    %p143 = scmp.ne.s32.totalorder %s132, %s133
    %p144 = scmp.eq.s32.totalorder %s42, 0
    %p145 = por %p143, %p144
    %p146 = scmp.ne.s32.totalorder %s132, %s133
    %p147 = scmp.eq.s32.totalorder %s43, 3
    %p148 = por %p146, %p147
    %p150 = scmp.ne.s32.totalorder %s133, %s149
    %p151 = scmp.eq.s32.totalorder %s43, 0
    %p152 = por %p150, %p151
    %s153 = sld [smem:[#allocation3 + %s44]]
    %s154 = sld [smem:[#allocation3 + %s56]]
    %s155 = ssub.s32 %s153, %s154
    %p156 = scmp.eq.s32.totalorder %s155, 0
    %s158 = sadd.s32 %s157, 1
    %s159 = scalar_select %p156, %s157, %s158
    %p162 = pneg %p156
    %p163 = scmp.eq.s32.totalorder %s37, 3
    %p164 = por %p162, %p163
    %p165 = scmp.ne.s32.totalorder %s157, %s160
    %p166 = scmp.eq.s32.totalorder %s37, 0
    %p167 = por %p165, %p166
    %p168 = scmp.ne.s32.totalorder %s157, %s160
    %p169 = scmp.eq.s32.totalorder %s42, 3
    %p170 = por %p168, %p169
    %p171 = scmp.ne.s32.totalorder %s160, %s161
    %p172 = scmp.eq.s32.totalorder %s42, 0
    %p173 = por %p171, %p172
    %p174 = scmp.ne.s32.totalorder %s160, %s161
    %p175 = scmp.eq.s32.totalorder %s43, 3
    %p176 = por %p174, %p175
    %p178 = scmp.ne.s32.totalorder %s161, %s177
    %p179 = scmp.eq.s32.totalorder %s43, 0
    %p180 = por %p178, %p179
    %s181 = sld [smem:[#allocation3 + %s44]]
    %s182 = sld [smem:[#allocation3 + %s56]]
    %s183 = ssub.s32 %s181, %s182
    %p184 = scmp.eq.s32.totalorder %s183, 0
    %s186 = sadd.s32 %s185, 1
    %s187 = scalar_select %p184, %s185, %s186
    %p190 = pneg %p184
    %p191 = scmp.eq.s32.totalorder %s37, 3
    %p192 = por %p190, %p191
    %p193 = scmp.ne.s32.totalorder %s185, %s188
    %p194 = scmp.eq.s32.totalorder %s37, 0
    %p195 = por %p193, %p194
    %p196 = scmp.ne.s32.totalorder %s185, %s188
    %p197 = scmp.eq.s32.totalorder %s42, 3
    %p198 = por %p196, %p197
    %p199 = scmp.ne.s32.totalorder %s188, %s189
    %p200 = scmp.eq.s32.totalorder %s42, 0
    %p201 = por %p199, %p200
    %p202 = scmp.ne.s32.totalorder %s188, %s189
    %p203 = scmp.eq.s32.totalorder %s43, 3
    %p204 = por %p202, %p203
    %p206 = scmp.ne.s32.totalorder %s189, %s205
    %p207 = scmp.eq.s32.totalorder %s43, 0
    %p208 = por %p206, %p207
    %p209 = scmp.le.s32.totalorder 1, %s37
    %p210 = scmp.lt.s32.totalorder %s37, 5
    %p211 = pnand %p209, %p210
    %p212 = pneg %p211
    // Predicated region
    $region9: #{_forward.3} parent=5 // pred_check
      _
    $region10: #{_forward.3} parent=5 // pred_check_branch
      %214 = sbr.rel (%p211) target = $region12
    $region11: #{_forward.3} parent=5 // pred_region
      %s215 = ssub.s32 %s37, 1
    $region12: #{_forward.3} parent=5 // pred_fallthru
      _
    %p216 = scmp.lt.s32.totalorder %s37, 4
    // Predicated region
    $region13: #{_forward.3} parent=5 // pred_check
      %p217 = pneg %p216
    $region14: #{_forward.3} parent=5 // pred_check_branch
      %219 = sbr.rel (%p217) target = $region16
    $region15: #{_forward.3} parent=5 // pred_region
      // Predicated region
      $region17: #{_forward.3} parent=15 // pred_check
        %p220 = pneg %p71
      $region18: #{_forward.3} parent=15 // pred_check_branch
        %222 = sbr.rel (%p220) target = $region20
      $region19: #{_forward.3} parent=15 // pred_region
        %s223 = sld [smem:[#allocation3 + %s44]]
        %s224 = smul.u32 2, %s223
        %p225 = scmp.lt.s32.totalorder %s224, 1
        %s226 = scalar_select %p225, %s224, 1
        %s227 = smul.addr %s226, 8
        %s228 = scalar_lea.vmem %s4, %s227
        %s229 = sld [smem:[#allocation3 + %s44]]
        %s230 = smul.u32 2, %s229
      $region20: #{_forward.3} parent=15 // pred_fallthru
        _
      // Predicated region
      $region21: #{_forward.3} parent=15 // pred_check
        %p231 = pneg %p105
      $region22: #{_forward.3} parent=15 // pred_check_branch
        %233 = sbr.rel (%p231) target = $region24
      $region23: #{_forward.3} parent=15 // pred_region
        %s234 = sld [smem:[#allocation6 + %s44]]
        %s235 = sld [smem:[#allocation4 + %s44]]
        %s236 = smul.u32 %s234, %s45
        %p237 = scmp.lt.s32.totalorder %s235, 3
        %s238 = scalar_select %p237, %s235, 3
        %p239 = scmp.lt.s32.totalorder %s236, 0
        %s240 = scalar_select %p239, %s236, 0
        %s241 = smul.addr %s240, 4
        %s242 = smul.addr %s238, 4
        %s243 = sadd.s32 %s241, %s242
        %s244 = smul.addr %s243, 8
        %s245 = scalar_lea.vmem %s5, %s244
        %s246 = sld [smem:[#allocation6 + %s44]]
        %s247 = sld [smem:[#allocation4 + %s44]]
        %s248 = smul.u32 %s246, %s45
      $region24: #{_forward.3} parent=15 // pred_fallthru
        _
      // Predicated region
      $region25: #{_forward.3} parent=15 // pred_check
        %p249 = pneg %p139
      $region26: #{_forward.3} parent=15 // pred_check_branch
        %251 = sbr.rel (%p249) target = $region28
      $region27: #{_forward.3} parent=15 // pred_region
        %s252 = sld [smem:[#allocation6 + %s44]]
        %s253 = sld [smem:[#allocation4 + %s44]]
        %s254 = smul.u32 %s252, %s45
        %s255 = smul.u32 8, %s254
        %p256 = scmp.lt.s32.totalorder %s253, 3
        %s257 = scalar_select %p256, %s253, 3
        %p258 = scmp.lt.s32.totalorder %s255, 7
        %s259 = scalar_select %p258, %s255, 7
        %s260 = smul.addr %s257, 8
        %s261 = sadd.s32 %s259, %s260
        %s262 = smul.addr %s261, 8
        %s263 = scalar_lea.vmem %s6, %s262
        %s264 = sld [smem:[#allocation6 + %s44]]
        %s265 = sld [smem:[#allocation4 + %s44]]
        %s266 = smul.u32 %s264, %s45
        %s267 = smul.u32 8, %s266
      $region28: #{_forward.3} parent=15 // pred_fallthru
        _
      // Predicated region
      $region29: #{_forward.3} parent=15 // pred_check
        %p268 = pneg %p167
      $region30: #{_forward.3} parent=15 // pred_check_branch
        %270 = sbr.rel (%p268) target = $region32
      $region31: #{_forward.3} parent=15 // pred_region
        %s271 = sld [smem:[#allocation3 + %s44]]
        %s272 = smul.u32 2, %s271
        %p273 = scmp.lt.s32.totalorder %s272, 1
        %s274 = scalar_select %p273, %s272, 1
        %s275 = smul.addr %s274, 8
        %s276 = scalar_lea.vmem %s7, %s275
        %s277 = sld [smem:[#allocation3 + %s44]]
        %s278 = smul.u32 2, %s277
      $region32: #{_forward.3} parent=15 // pred_fallthru
        _
    $region16: #{_forward.3} parent=5 // pred_fallthru
      _
    %p279 = scmp.le.s32.totalorder 1, %s37
    %p280 = scmp.lt.s32.totalorder %s37, 5
    %p281 = pnand %p279, %p280
    %p282 = pneg %p281
    // Predicated region
    $region33: #{_forward.3} parent=5 // pred_check
      _
    $region34: #{_forward.3} parent=5 // pred_check_branch
      %284 = sbr.rel (%p281) target = $region36
    $region35: #{_forward.3} parent=5 // pred_region
      %s285 = ssub.s32 %s37, 1
      %s286 = sld [smem:[#allocation3 + %s46]]
      %s287 = smul.u32 2, %s286
      %p288 = scmp.lt.s32.totalorder %s287, 1
      %s289 = scalar_select %p288, %s287, 1
      %s290 = smul.addr %s289, 8
      %s291 = scalar_lea.vmem %s4, %s290
      %p292 = pneg %p77
      %p293 = pneg %p74
      %s294 = sld [smem:[#allocation6 + %s46]]
      %s295 = sld [smem:[#allocation4 + %s46]]
      %s296 = smul.u32 %s294, %s47
      %p297 = scmp.lt.s32.totalorder %s295, 3
      %s298 = scalar_select %p297, %s295, 3
      %p299 = scmp.lt.s32.totalorder %s296, 0
      %s300 = scalar_select %p299, %s296, 0
      %s301 = smul.addr %s300, 4
      %s302 = smul.addr %s298, 4
      %s303 = sadd.s32 %s301, %s302
      %s304 = smul.addr %s303, 8
      %s305 = scalar_lea.vmem %s5, %s304
      %p306 = pneg %p111
      %p307 = pneg %p108
      %s308 = sld [smem:[#allocation6 + %s46]]
      %s309 = sld [smem:[#allocation4 + %s46]]
      %s310 = smul.u32 %s308, %s47
      %s311 = smul.u32 8, %s310
      %p312 = scmp.lt.s32.totalorder %s309, 3
      %s313 = scalar_select %p312, %s309, 3
      %p314 = scmp.lt.s32.totalorder %s311, 7
      %s315 = scalar_select %p314, %s311, 7
      %s316 = smul.addr %s313, 8
      %s317 = sadd.s32 %s315, %s316
      %s318 = smul.addr %s317, 8
      %s319 = scalar_lea.vmem %s6, %s318
      %p320 = pneg %p145
      %p321 = pneg %p142
      %s322 = sld [smem:[#allocation3 + %s46]]
      %s323 = smul.u32 2, %s322
      %p324 = scmp.lt.s32.totalorder %s323, 1
      %s325 = scalar_select %p324, %s323, 1
      %s326 = smul.addr %s325, 8
      %s327 = scalar_lea.vmem %s7, %s326
      %p328 = pneg %p173
      %p329 = pneg %p170
      %p330 = pneg %p201
      %p331 = pneg %p198
      %s332 = sld [smem:[#allocation3 + %s46]]
      %s333 = smul.u32 2, %s332
      %p334 = scmp.lt.s32.totalorder %s333, 1
      %s335 = scalar_select %p334, %s333, 1
      %s336 = smul.addr %s335, 8
      %s337 = scalar_lea.vmem %s8, %s336
      %s338 = sld [smem:[#allocation3 + %s46]]
      %s339 = smul.u32 2, %s338
      %p340 = scmp.lt.s32.totalorder %s339, 1
      %s341 = scalar_select %p340, %s339, 1
      %s342 = smul.addr %s341, 8
      %s343 = scalar_lea.vmem %s4, %s342
      %s344 = sld [smem:[#allocation3 + %s46]]
      %s345 = smul.u32 2, %s344
      %s346 = sld [smem:[#allocation6 + %s46]]
      %s347 = sld [smem:[#allocation4 + %s46]]
      %s348 = smul.u32 %s346, %s47
      %p349 = scmp.lt.s32.totalorder %s347, 3
      %s350 = scalar_select %p349, %s347, 3
      %p351 = scmp.lt.s32.totalorder %s348, 0
      %s352 = scalar_select %p351, %s348, 0
      %s353 = smul.addr %s352, 4
      %s354 = smul.addr %s350, 4
      %s355 = sadd.s32 %s353, %s354
      %s356 = smul.addr %s355, 8
      %s357 = scalar_lea.vmem %s5, %s356
      %s358 = sld [smem:[#allocation6 + %s46]]
      %s359 = sld [smem:[#allocation4 + %s46]]
      %s360 = smul.u32 %s358, %s47
      %s361 = sld [smem:[#allocation6 + %s46]]
      %s362 = sld [smem:[#allocation4 + %s46]]
      %s363 = smul.u32 %s361, %s47
      %s364 = smul.u32 8, %s363
      %p365 = scmp.lt.s32.totalorder %s362, 3
      %s366 = scalar_select %p365, %s362, 3
      %p367 = scmp.lt.s32.totalorder %s364, 7
      %s368 = scalar_select %p367, %s364, 7
      %s369 = smul.addr %s366, 8
      %s370 = sadd.s32 %s368, %s369
      %s371 = smul.addr %s370, 8
      %s372 = scalar_lea.vmem %s6, %s371
      %s373 = sld [smem:[#allocation6 + %s46]]
      %s374 = sld [smem:[#allocation4 + %s46]]
      %s375 = smul.u32 %s373, %s47
      %s376 = smul.u32 8, %s375
      %s377 = sld [smem:[#allocation3 + %s46]]
      %s378 = smul.u32 2, %s377
      %p379 = scmp.lt.s32.totalorder %s378, 1
      %s380 = scalar_select %p379, %s378, 1
      %s381 = smul.addr %s380, 8
      %s382 = scalar_lea.vmem %s7, %s381
      %s383 = sld [smem:[#allocation3 + %s46]]
      %s384 = smul.u32 2, %s383
      %s385 = sld [smem:[#allocation3 + %s46]]
      %s386 = smul.u32 2, %s385
      %p387 = scmp.lt.s32.totalorder %s386, 1
      %s388 = scalar_select %p387, %s386, 1
      %s389 = smul.addr %s388, 8
      %s390 = scalar_lea.vmem %s8, %s389
      %s391 = sld [smem:[#allocation3 + %s46]]
      %s392 = smul.u32 2, %s391
      %s393 = sld [smem:[#allocation5 + %s46]]
      %p394 = scmp.ne.s32.totalorder %s393, 0
      %p395 = scmp.eq.s32.totalorder %s47, 0
      %p396 = pnand %p394, %p395
      %p397 = pneg %p396
      // Predicated region
      $region37: #{_forward.3} parent=35 // pred_check
        _
      $region38: #{_forward.3} parent=35 // pred_check_branch
        %399 = sbr.rel (%p396) target = $region40
      $region39: #{_forward.3} parent=35 // pred_region
        %vm400 = vcmask 261120
        %401 = vst.msk [vmem:[%s390] sm:$0xff] %vm400, 0.0
        %402 = vst.msk [vmem:[%s390 + $0x8] sm:$0xff] %vm400, 0.0
      $region40: #{_forward.3} parent=35 // pred_fallthru
        _
      %s403 = sld [smem:[#allocation6 + %s46]]
      %p404 = scmp.ne.s32.totalorder %s403, 0
      // Predicated region
      $region41: #{_forward.3} parent=35 // pred_check
        %p405 = pneg %p404
      $region42: #{_forward.3} parent=35 // pred_check_branch
        %407 = sbr.rel (%p405) target = $region44
      $region43: #{_forward.3} parent=35 // pred_region
        %s408 = sld [smem:[#allocation4 + %s46]]
        %v409 = vld [vmem:[%s343] sm:$0xff]
        %v410 = vld [vmem:[%s343 + $0x8] sm:$0xff]
        %v411 = vld [vmem:[%s357] sm:$0xff]
        %v412 = vld [vmem:[%s357 + $0x8] sm:$0xff]
        %v413 = vld [vmem:[%s357 + $0x10] sm:$0xff]
        %v414 = vld [vmem:[%s357 + $0x18] sm:$0xff]
        %v415 = vld [vmem:[%s372] sm:$0xff]
        %v416 = vld [vmem:[%s372 + $0x8] sm:$0xff]
        %v417 = vld [vmem:[%s372 + $0x10] sm:$0xff]
        %v418 = vld [vmem:[%s372 + $0x18] sm:$0xff]
        %v419 = vld [vmem:[%s372 + $0x20] sm:$0xff]
        %v420 = vld [vmem:[%s372 + $0x28] sm:$0xff]
        %v421 = vld [vmem:[%s372 + $0x30] sm:$0xff]
        %v422 = vld [vmem:[%s372 + $0x38] sm:$0xff]
        %v423 = vld [vmem:[%s382] sm:$0xff]
        %v424 = vld [vmem:[%s382 + $0x8] sm:$0xff]
        %v425 = vlaneseq
        %v426 = vand.u32 %v425, 127
        %v427 = vstv %s408
        %vm428 = vcmp.eq.s32.totalorder %v426, %v427
        %v429 = vsel %vm428, %v423, 0.0
        %v430 = vsel %vm428, %v424, 0.0
        %vm431 = vcmask 31744
        %v432 = vsel %vm431, %v429, 0.0
        %433 = vadd.xlane.f32.xlu0 %v432
        %v434 = vpop.xlane.xlu0 %433
        %v435 = vsel %vm431, %v430, 0.0
        %436 = vadd.xlane.f32.xlu0 %v435
        %v437 = vpop.xlane.xlu0 %436
        %vm438 = vcmask 261120
        %v440 = vsel %vm438, %v409, 0
        %v443 = vsel %vm438, %v410, 0
        %445 = vmatpush.msra.mxu0 0.0
        %446 = vmatpush.msra.mxu0 0.0
        %447 = vmatpush.msra.mxu0 0.0
        %448 = vmatpush.msra.mxu0 0.0
        %449 = vmatpush.msra.mxu0 0.0
        %450 = vmatpush.msra.mxu0 0.0
        %451 = vmatpush.msra.mxu0 0.0
        %452 = vmatpush.msra.mxu0 0.0
        %453 = vmatpush.msra.mxu0 0.0
        %454 = vmatpush.msra.mxu0 0.0
        %455 = vmatpush.msra.mxu0 0.0
        %456 = vmatpush.msra.mxu0 0.0
        %457 = vmatpush.msra.mxu0 %v414
        %458 = vmatpush.msra.mxu0 %v413
        %459 = vmatpush.msra.mxu0 %v412
        %460 = vmatpush.msra.mxu0 %v411
        %461 = vmatmul.f32.gmra.mxu0 %v440
        %v462 = vpop.f32.mrf.mxu0
        %v463 = vadd.f32 0.0, %v462
        %464 = vmatmul.f32.gmra.mxu0 %v443
        %v465 = vpop.f32.mrf.mxu0
        %v466 = vadd.f32 0.0, %v465
        %467 = vdwg.mxu0
        %v468 = vmul.f32 %v463, 0.5
        %v469 = vmul.f32 %v466, 0.5
        %v470 = vmul.f32 %v463, 0.70710677
        %v471 = vmul.f32 %v466, 0.70710677
        %v472 = vmul.f32 %v470, %v470
        %v473 = vmin.f32 16.0, %v472
        %v474 = vmul.f32 %v473, 2.1237322e-06
        %v475 = vadd.f32 %v474, 0.00028619796
        %v476 = vmul.f32 %v473, %v475
        %v477 = vadd.f32 %v476, 0.0036580483
        %v478 = vmul.f32 %v473, %v477
        %v479 = vadd.f32 %v478, 0.05243302
        %v480 = vmul.f32 %v473, %v479
        %v481 = vadd.f32 %v480, 0.18741608
        %v482 = vmul.f32 %v473, %v481
        %v483 = vadd.f32 %v482, 1.1283791
        %v484 = vmul.f32 %v470, %v483
        %v485 = vmul.f32 %v473, 3.8918573e-05
        %v486 = vadd.f32 %v485, 0.001143296
        %v487 = vmul.f32 %v473, %v486
        %v488 = vadd.f32 %v487, 0.014752088
        %v489 = vmul.f32 %v473, %v488
        %v490 = vadd.f32 %v489, 0.112945676
        %v491 = vmul.f32 %v473, %v490
        %v492 = vadd.f32 %v491, 0.4994258
        %v493 = vmul.f32 %v473, %v492
        %v494 = vadd.f32 %v493, 1.0
        %v495 = vrcp.pop %v494
        %v496 = vmul.f32 %v494, %v495
        %v497 = vsub.f32 1.0, %v496
        %v498 = vmul.f32 %v495, %v497
        %v499 = vadd.f32 %v495, %v498
        %vm500 = vweird.f32 %v494
        %vm501 = vweird.f32 %v495
        %vm502 = vmor %vm500, %vm501
        %v503 = vsel %vm502, %v495, %v499
        %v504 = vand.u32 2147483647, %v494
        %vm505 = vcmp.eq.f32.partialorder %v504, 8.507059e+37
        %v506 = vand.u32 %v494, 2147483648
        %v507 = vor.u32 1.1754944e-38, %v506
        %v508 = vsel %vm505, %v507, %v503
        %v509 = vmul.f32 %v484, %v508
        %v510 = vmin.f32 %v509, 1.0
        %v511 = vmax.f32 %v510, -1.0
        %v512 = vmul.f32 %v471, %v471
        %v513 = vmin.f32 16.0, %v512
        %v514 = vmul.f32 %v513, 2.1237322e-06
        %v515 = vadd.f32 %v514, 0.00028619796
        %v516 = vmul.f32 %v513, %v515
        %v517 = vadd.f32 %v516, 0.0036580483
        %v518 = vmul.f32 %v513, %v517
        %v519 = vadd.f32 %v518, 0.05243302
        %v520 = vmul.f32 %v513, %v519
        %v521 = vadd.f32 %v520, 0.18741608
        %v522 = vmul.f32 %v513, %v521
        %v523 = vadd.f32 %v522, 1.1283791
        %v524 = vmul.f32 %v471, %v523
        %v525 = vmul.f32 %v513, 3.8918573e-05
        %v526 = vadd.f32 %v525, 0.001143296
        %v527 = vmul.f32 %v513, %v526
        %v528 = vadd.f32 %v527, 0.014752088
        %v529 = vmul.f32 %v513, %v528
        %v530 = vadd.f32 %v529, 0.112945676
        %v531 = vmul.f32 %v513, %v530
        %v532 = vadd.f32 %v531, 0.4994258
        %v533 = vmul.f32 %v513, %v532
        %v534 = vadd.f32 %v533, 1.0
        %v535 = vrcp.pop %v534
        %v536 = vmul.f32 %v534, %v535
        %v537 = vsub.f32 1.0, %v536
        %v538 = vmul.f32 %v535, %v537
        %v539 = vadd.f32 %v535, %v538
        %vm540 = vweird.f32 %v534
        %vm541 = vweird.f32 %v535
        %vm542 = vmor %vm540, %vm541
        %v543 = vsel %vm542, %v535, %v539
        %v544 = vand.u32 2147483647, %v534
        %vm545 = vcmp.eq.f32.partialorder %v544, 8.507059e+37
        %v546 = vand.u32 %v534, 2147483648
        %v547 = vor.u32 1.1754944e-38, %v546
        %v548 = vsel %vm545, %v547, %v543
        %v549 = vmul.f32 %v524, %v548
        %v550 = vmin.f32 %v549, 1.0
        %v551 = vmax.f32 %v550, -1.0
        %v552 = vadd.f32 %v511, 1.0
        %v553 = vadd.f32 %v551, 1.0
        %v554 = vmul.f32 %v468, %v552
        %v555 = vmul.f32 %v469, %v553
        %vm556 = vcmask 523264
        %v558 = vsel %vm556, %v554, 0
        %v561 = vsel %vm556, %v555, 0
        %563 = vmatpush.msra.mxu0 0.0
        %564 = vmatpush.msra.mxu0 0.0
        %565 = vmatpush.msra.mxu0 0.0
        %566 = vmatpush.msra.mxu0 0.0
        %567 = vmatpush.msra.mxu0 0.0
        %568 = vmatpush.msra.mxu0 0.0
        %569 = vmatpush.msra.mxu0 0.0
        %570 = vmatpush.msra.mxu0 0.0
        %571 = vmatpush.msra.mxu0 %v422
        %572 = vmatpush.msra.mxu0 %v421
        %573 = vmatpush.msra.mxu0 %v420
        %574 = vmatpush.msra.mxu0 %v419
        %575 = vmatpush.msra.mxu0 %v418
        %576 = vmatpush.msra.mxu0 %v417
        %577 = vmatpush.msra.mxu0 %v416
        %578 = vmatpush.msra.mxu0 %v415
        %579 = vmatmul.f32.gmra.mxu0 %v558
        %v580 = vpop.f32.mrf.mxu0
        %v581 = vadd.f32 0.0, %v580
        %582 = vmatmul.f32.gmra.mxu0 %v561
        %v583 = vpop.f32.mrf.mxu0
        %v584 = vadd.f32 0.0, %v583
        %585 = vdwg.mxu0
        %v586 = vld [vmem:[%s390] sm:$0xff]
        %v587 = vld [vmem:[%s390 + $0x8] sm:$0xff]
        %v588 = vmul.f32 %v434, %v581
        %v589 = vmul.f32 %v437, %v584
        %v590 = vadd.f32 %v586, %v588
        %v591 = vadd.f32 %v587, %v589
        %592 = vst.msk [vmem:[%s390] sm:$0xff] %vm438, %v590
        %593 = vst.msk [vmem:[%s390 + $0x8] sm:$0xff] %vm438, %v591
      $region44: #{_forward.3} parent=35 // pred_fallthru
        _
      %s594 = sld [smem:[#allocation3 + %s46]]
      %s595 = smul.u32 2, %s594
      %p596 = scmp.lt.s32.totalorder %s595, 1
      %s597 = scalar_select %p596, %s595, 1
      %s598 = smul.addr %s597, 8
      %s599 = scalar_lea.vmem %s8, %s598
      // Predicated region
      $region45: #{_forward.3} parent=35 // pred_check
        %p600 = pneg %p198
      $region46: #{_forward.3} parent=35 // pred_check_branch
        %602 = sbr.rel (%p600) target = $region48
      $region47: #{_forward.3} parent=35 // pred_region
        %s603 = sld [smem:[#allocation3 + %s46]]
        %s604 = smul.u32 2, %s603
      $region48: #{_forward.3} parent=35 // pred_fallthru
        _
    $region36: #{_forward.3} parent=5 // pred_fallthru
      _
    %p605 = scmp.le.s32.totalorder 2, %s37
    // Predicated region
    $region49: #{_forward.3} parent=5 // pred_check
      %p606 = pneg %p605
    $region50: #{_forward.3} parent=5 // pred_check_branch
      %608 = sbr.rel (%p606) target = $region52
    $region51: #{_forward.3} parent=5 // pred_region
      %s609 = ssub.s32 %s37, 2
      // Predicated region
      $region53: #{_forward.3} parent=51 // pred_check
        %p610 = pneg %p204
      $region54: #{_forward.3} parent=51 // pred_check_branch
        %612 = sbr.rel (%p610) target = $region56
      $region55: #{_forward.3} parent=51 // pred_region
        %s613 = sld [smem:[#allocation3 + %s48]]
        %s614 = smul.u32 2, %s613
        %p615 = scmp.lt.s32.totalorder %s614, 1
        %s616 = scalar_select %p615, %s614, 1
        %s617 = smul.addr %s616, 8
        %s618 = scalar_lea.vmem %s8, %s617
      $region56: #{_forward.3} parent=51 // pred_fallthru
        _
    $region52: #{_forward.3} parent=5 // pred_fallthru
      _
  $region6: #{_forward.3} parent=0 // loop_footer
    %s41 = sadd.s32 1, %s37
  $region7: #{_forward.3} parent=0 // loop_footer_branch
    %36 = sbr.rel target = $region3
  $region8: #{_forward.3} parent=0 // loop_exit
    _

</llo_original>
